<compile_context>
chip_gen: v5e
topology: v5e:2x2
jax: 0.10.0
libtpu: 0.0.40
codegen_flags: <defaults>
</compile_context>

<pallas_src>
import functools
import jax
import jax.numpy as jnp
from jax.experimental import pallas as pl
from jax.experimental.pallas import tpu as pltpu


def _fused_mlp_kernel(*refs, n_layers):
    """refs = (z_ref, w1, b1, w2, b2, ..., wN, bN, o_ref).

    Computes o = sigmoid(relu(...relu(z@W1+b1)...)@WN + bN) entirely in
    VMEM/vregs; only the final lane-dense result is written out.
    """
    z_ref = refs[0]
    o_ref = refs[-1]
    h = z_ref[...]
    for i in range(n_layers):
        w = refs[1 + 2 * i][...]
        b = refs[2 + 2 * i][...]
        h = jnp.dot(h, w, preferred_element_type=jnp.float32) + b
        if i < n_layers - 1:
            h = jnp.maximum(h, 0.0)          # ReLU (hidden layers)
        else:
            h = jax.nn.sigmoid(h)            # Sigmoid (output layer, EUP)
    o_ref[...] = h.astype(o_ref.dtype)


def vae_decoder_forward(z, params, *, batch_tile=None):
    """Fused forward pass. z: (B, latent) -> (B, data_size).

    Matches nn.Sequential([Linear, ReLU] * len(hidden_sizes) + [Linear, Sigmoid]).
    """
    B, latent = z.shape
    n_layers = len(params)
    out_dim = params[-1][0].shape[1]

    # Single block unless the batch is large enough to be worth sharding
    # across TensorCores (v7x has 2 TCs; v5e/v6e this just aids pipelining).
    if batch_tile is None:
        batch_tile = 256 if (B > 512 and B % 256 == 0) else B
    if B % batch_tile != 0:
        batch_tile = B
    grid = (B // batch_tile,)

    in_specs = [pl.BlockSpec((batch_tile, latent), lambda i: (i, 0))]
    flat_args = [z]
    for (w, b) in params:
        in_sz, out_sz = w.shape
        in_specs.append(pl.BlockSpec((in_sz, out_sz), lambda i: (0, 0)))
        in_specs.append(pl.BlockSpec((1, out_sz), lambda i: (0, 0)))
        flat_args.append(w)
        flat_args.append(b)

    out_spec = pl.BlockSpec((batch_tile, out_dim), lambda i: (i, 0))

    # Advisory cost hint for XLA scheduling.
    flops = 2 * B * sum(w.shape[0] * w.shape[1] for w, _ in params)
    bytes_accessed = int(
        sum(a.size * a.dtype.itemsize for a in flat_args) + B * out_dim * 4
    )
    transcendentals = B * out_dim  # final sigmoid -> exp per output element

    kernel = functools.partial(_fused_mlp_kernel, n_layers=n_layers)
    return pl.pallas_call(
        kernel,
        out_shape=jax.ShapeDtypeStruct((B, out_dim), jnp.float32),
        grid=grid,
        in_specs=in_specs,
        out_specs=out_spec,
        compiler_params=pltpu.CompilerParams(
            dimension_semantics=("parallel",),
        ),
        cost_estimate=pl.CostEstimate(
            flops=flops,
            transcendentals=transcendentals,
            bytes_accessed=bytes_accessed,
        ),
    )(*flat_args)


def init_vae_decoder_params(key, data_size, hidden_sizes, latent_size):
    """Deterministic init mirroring the PyTorch module's layer shapes.

    nn.Linear(in, out) has weight (out, in); we store it transposed (in, out).
    """
    sizes = [latent_size] + list(hidden_sizes) + [data_size]
    params = []
    for in_sz, out_sz in zip(sizes[:-1], sizes[1:]):
        key, wk, bk = jax.random.split(key, 3)
        bound = 1.0 / jnp.sqrt(in_sz)  # same scale as PyTorch default uniform init
        w = jax.random.uniform(wk, (in_sz, out_sz), jnp.float32, -bound, bound)
        b = jax.random.uniform(bk, (1, out_sz), jnp.float32, -bound, bound)
        params.append((w, b))
    return params


def _reference_forward(z, params):
    h = z
    n_layers = len(params)
    for i, (w, b) in enumerate(params):
        h = h @ w + b
        h = jax.nn.sigmoid(h) if i == n_layers - 1 else jnp.maximum(h, 0.0)
    return h


if __name__ == "__main__":
    # Small shapes consistent with the module: latent=16, hidden=[32, 64], data=128.
    batch = 8
    latent_size = 16
    hidden_sizes = [32, 64]
    data_size = 128

    key = jax.random.PRNGKey(0)
    key, zk = jax.random.split(key)
    z = jax.random.normal(zk, (batch, latent_size), dtype=jnp.float32)

    params = init_vae_decoder_params(key, data_size, hidden_sizes, latent_size)

    out = vae_decoder_forward(z, params)
    out = jax.block_until_ready(out)

    # Sanity check against a plain-JAX reference.
    ref = jax.block_until_ready(_reference_forward(z, params))
    assert out.shape == (batch, data_size)
    assert jnp.max(jnp.abs(out - ref)) < 1e-5

    print("KERNEL_OK")
</pallas_src>

<mosaic_0001>
module attributes {stable_mosaic.version = 11 : i64} {
  func.func @_fused_mlp_kernel(%arg0: i32, %arg1: memref<8x16xf32, #tpu.memory_space<vmem>>, %arg2: memref<16x32xf32, #tpu.memory_space<vmem>>, %arg3: memref<1x32xf32, #tpu.memory_space<vmem>>, %arg4: memref<32x64xf32, #tpu.memory_space<vmem>>, %arg5: memref<1x64xf32, #tpu.memory_space<vmem>>, %arg6: memref<64x128xf32, #tpu.memory_space<vmem>>, %arg7: memref<1x128xf32, #tpu.memory_space<vmem>>, %arg8: memref<8x128xf32, #tpu.memory_space<vmem>>) attributes {dimension_semantics = [#tpu.dimension_semantics<parallel>], iteration_bounds = array<i64: 1>, scalar_prefetch = 0 : i64, scratch_operands = 0 : i64, tpu.core_type = #tpu.core_type<tc>, window_params = [{transform_indices = @transform_0, window_bounds = array<i64: 8, 16>}, {pipeline_mode = #tpu.pipeline_mode<synchronous>, transform_indices = @transform_1, window_bounds = array<i64: 16, 32>}, {pipeline_mode = #tpu.pipeline_mode<synchronous>, transform_indices = @transform_2, window_bounds = array<i64: 1, 32>}, {pipeline_mode = #tpu.pipeline_mode<synchronous>, transform_indices = @transform_3, window_bounds = array<i64: 32, 64>}, {pipeline_mode = #tpu.pipeline_mode<synchronous>, transform_indices = @transform_4, window_bounds = array<i64: 1, 64>}, {pipeline_mode = #tpu.pipeline_mode<synchronous>, transform_indices = @transform_5, window_bounds = array<i64: 64, 128>}, {pipeline_mode = #tpu.pipeline_mode<synchronous>, transform_indices = @transform_6, window_bounds = array<i64: 1, 128>}, {transform_indices = @transform_7, window_bounds = array<i64: 8, 128>}]} {
    %c0 = arith.constant 0 : index
    %c0_0 = arith.constant 0 : index
    %0 = vector.load %arg1[%c0, %c0_0] : memref<8x16xf32, #tpu.memory_space<vmem>>, vector<8x16xf32>
    %c0_1 = arith.constant 0 : index
    %c0_2 = arith.constant 0 : index
    %1 = vector.load %arg2[%c0_1, %c0_2] : memref<16x32xf32, #tpu.memory_space<vmem>>, vector<16x32xf32>
    %c0_3 = arith.constant 0 : index
    %c0_4 = arith.constant 0 : index
    %2 = vector.load %arg3[%c0_3, %c0_4] : memref<1x32xf32, #tpu.memory_space<vmem>>, vector<1x32xf32>
    %cst = arith.constant dense<0.000000e+00> : vector<8x32xf32>
    %3 = tpu.matmul %0, %1, %cst {dimension_numbers = #tpu.dot_dimension_numbers<[1], [0], [0], [1], [0, 0, 1, 1], [], []>} : vector<8x16xf32>, vector<16x32xf32>, vector<8x32xf32> -> vector<8x32xf32>
    %4 = vector.broadcast %2 : vector<1x32xf32> to vector<8x32xf32>
    %5 = arith.addf %3, %4 : vector<8x32xf32>
    %cst_5 = arith.constant 0.000000e+00 : f32
    %6 = vector.broadcast %cst_5 : f32 to vector<8x32xf32>
    %7 = arith.maximumf %5, %6 : vector<8x32xf32>
    %c0_6 = arith.constant 0 : index
    %c0_7 = arith.constant 0 : index
    %8 = vector.load %arg4[%c0_6, %c0_7] : memref<32x64xf32, #tpu.memory_space<vmem>>, vector<32x64xf32>
    %c0_8 = arith.constant 0 : index
    %c0_9 = arith.constant 0 : index
    %9 = vector.load %arg5[%c0_8, %c0_9] : memref<1x64xf32, #tpu.memory_space<vmem>>, vector<1x64xf32>
    %cst_10 = arith.constant dense<0.000000e+00> : vector<8x64xf32>
    %10 = tpu.matmul %7, %8, %cst_10 {dimension_numbers = #tpu.dot_dimension_numbers<[1], [0], [0], [1], [0, 0, 1, 1], [], []>} : vector<8x32xf32>, vector<32x64xf32>, vector<8x64xf32> -> vector<8x64xf32>
    %11 = vector.broadcast %9 : vector<1x64xf32> to vector<8x64xf32>
    %12 = arith.addf %10, %11 : vector<8x64xf32>
    %cst_11 = arith.constant 0.000000e+00 : f32
    %13 = vector.broadcast %cst_11 : f32 to vector<8x64xf32>
    %14 = arith.maximumf %12, %13 : vector<8x64xf32>
    %c0_12 = arith.constant 0 : index
    %c0_13 = arith.constant 0 : index
    %15 = vector.load %arg6[%c0_12, %c0_13] : memref<64x128xf32, #tpu.memory_space<vmem>>, vector<64x128xf32>
    %c0_14 = arith.constant 0 : index
    %c0_15 = arith.constant 0 : index
    %16 = vector.load %arg7[%c0_14, %c0_15] : memref<1x128xf32, #tpu.memory_space<vmem>>, vector<1x128xf32>
    %cst_16 = arith.constant dense<0.000000e+00> : vector<8x128xf32>
    %17 = tpu.matmul %14, %15, %cst_16 {dimension_numbers = #tpu.dot_dimension_numbers<[1], [0], [0], [1], [0, 0, 1, 1], [], []>} : vector<8x64xf32>, vector<64x128xf32>, vector<8x128xf32> -> vector<8x128xf32>
    %18 = vector.broadcast %16 : vector<1x128xf32> to vector<8x128xf32>
    %19 = arith.addf %17, %18 : vector<8x128xf32>
    %20 = arith.negf %19 : vector<8x128xf32>
    %21 = math.exp %20 : vector<8x128xf32>
    %cst_17 = arith.constant 1.000000e+00 : f32
    %22 = vector.broadcast %cst_17 : f32 to vector<8x128xf32>
    %23 = arith.addf %22, %21 : vector<8x128xf32>
    %24 = arith.divf %22, %23 : vector<8x128xf32>
    %c0_18 = arith.constant 0 : index
    %c0_19 = arith.constant 0 : index
    %25 = vector.load %arg8[%c0_18, %c0_19] : memref<8x128xf32, #tpu.memory_space<vmem>>, vector<8x128xf32>
    tpu.vector_store %arg8[%c0_18, %c0_19], %24 {strides = array<i32>} : memref<8x128xf32, #tpu.memory_space<vmem>>, vector<8x128xf32>,
    return
  }
  func.func @transform_0(%arg0: i32) -> (i32, i32) {
    %c0_i32 = arith.constant 0 : i32
    %c0_i32_0 = arith.constant 0 : i32
    return %arg0, %c0_i32 : i32, i32
  }
  func.func @transform_1(%arg0: i32) -> (i32, i32) {
    %c0_i32 = arith.constant 0 : i32
    %c0_i32_0 = arith.constant 0 : i32
    %c0_i32_1 = arith.constant 0 : i32
    return %c0_i32, %c0_i32_0 : i32, i32
  }
  func.func @transform_2(%arg0: i32) -> (i32, i32) {
    %c0_i32 = arith.constant 0 : i32
    %c0_i32_0 = arith.constant 0 : i32
    %c0_i32_1 = arith.constant 0 : i32
    return %c0_i32, %c0_i32_0 : i32, i32
  }
  func.func @transform_3(%arg0: i32) -> (i32, i32) {
    %c0_i32 = arith.constant 0 : i32
    %c0_i32_0 = arith.constant 0 : i32
    %c0_i32_1 = arith.constant 0 : i32
    return %c0_i32, %c0_i32_0 : i32, i32
  }
  func.func @transform_4(%arg0: i32) -> (i32, i32) {
    %c0_i32 = arith.constant 0 : i32
    %c0_i32_0 = arith.constant 0 : i32
    %c0_i32_1 = arith.constant 0 : i32
    return %c0_i32, %c0_i32_0 : i32, i32
  }
  func.func @transform_5(%arg0: i32) -> (i32, i32) {
    %c0_i32 = arith.constant 0 : i32
    %c0_i32_0 = arith.constant 0 : i32
    %c0_i32_1 = arith.constant 0 : i32
    return %c0_i32, %c0_i32_0 : i32, i32
  }
  func.func @transform_6(%arg0: i32) -> (i32, i32) {
    %c0_i32 = arith.constant 0 : i32
    %c0_i32_0 = arith.constant 0 : i32
    %c0_i32_1 = arith.constant 0 : i32
    return %c0_i32, %c0_i32_0 : i32, i32
  }
  func.func @transform_7(%arg0: i32) -> (i32, i32) {
    %c0_i32 = arith.constant 0 : i32
    %c0_i32_0 = arith.constant 0 : i32
    return %arg0, %c0_i32 : i32, i32
  }
}

</mosaic_0001>

<llo_original>
// kernel: tpu_custom_call.1
$region0: #{tpu_custom_call.1}
  #allocation0 [shape = 'u32[]', space=smem, size = 0x4, offset = 0x4, fixed_abs, tag = 'smem constant byte address 0x4 - core index']
  #allocation1 [shape = 'u32[72,128]{1,0:T(1,128)}', space=vmem, size = 0x9000, scoped, tag = 'internal scratch']
  %s0 = inlined_call_operand.hbm [shape: f32[8,16], index: 0, kind: input, shape index: {}]
  %s1 = inlined_call_operand.hbm [shape: f32[16,32], index: 1, kind: input, shape index: {}]
  %s2 = inlined_call_operand.vmem [shape: f32[1,32], index: 2, kind: input, shape index: {}]
  %s3 = inlined_call_operand.hbm [shape: f32[32,64], index: 3, kind: input, shape index: {}]
  %s4 = inlined_call_operand.vmem [shape: f32[1,64], index: 4, kind: input, shape index: {}]
  %s5 = inlined_call_operand.hbm [shape: f32[64,128], index: 5, kind: input, shape index: {}]
  %s6 = inlined_call_operand.vmem [shape: f32[1,128], index: 6, kind: input, shape index: {}]
  %s7 = inlined_call_operand.hbm [shape: f32[8,128], index: 7, kind: output, shape index: {}]
  %s8 = sld [smem:[#allocation0]]
  $region54: #{tpu_custom_call.1} parent=0
    _
  %s10 = ssub.s32 1, %s8
  %s11 = scalar_select 0, %s10, %s8
  $region1: #{tpu_custom_call.1} parent=0
    #allocation2 [shape = 'u8[4096]{0}', space=vmem, size = 0x1000, scoped, tag = 'input window, operand 0, single buffered']
    #allocation3 [shape = 's32[1]{0}', space=sflag, size = 0x4, scoped, tag = 'scoped memory for tpu_custom_call.1']
    #allocation4 [shape = 's32[1]{0}', space=sflag, size = 0x4, scoped, tag = 'scoped memory for tpu_custom_call.1']
    #allocation5 [shape = 'u8[8192]{0}', space=vmem, size = 0x2000, scoped, tag = 'input window, operand 1, single buffered']
    #allocation6 [shape = 's32[1]{0}', space=sflag, size = 0x4, scoped, tag = 'scoped memory for tpu_custom_call.1']
    #allocation7 [shape = 'u8[16384]{0}', space=vmem, size = 0x4000, scoped, tag = 'input window, operand 3, single buffered']
    #allocation8 [shape = 'u8[32768]{0}', space=vmem, size = 0x8000, scoped, tag = 'input window, operand 5, single buffered']
    #allocation9 [shape = 's32[1]{0}', space=sflag, size = 0x4, scoped, tag = 'scoped memory for tpu_custom_call.1']
    #allocation10 [shape = 'u8[4096]{0}', space=vmem, size = 0x1000, scoped, tag = 'output window, operand 0, single buffered']
    %12 = vsyncpa [#allocation3], 0
    %13 = vsyncpa [#allocation6], 0
    %14 = vsyncpa [#allocation9], 0
    %15 = vsyncpa [#allocation4], 0
    // Predicated region
    $region2: #{tpu_custom_call.1} parent=1 // pred_check
      _
    $region3: #{tpu_custom_call.1} parent=1 // pred_check_branch
      %17 = sbr.rel (0) target = $region5
    $region4: #{tpu_custom_call.1} parent=1 // pred_region
      %19 = vsyncadd [#allocation3], 0
      %s21 = sshll.u32 %s0, 4
      %s22 = int_to_ptr.hbm [resolvable:$true] %s21
      %s23 = sshll.u32 [#allocation2], 4
      %s24 = int_to_ptr.vmem [resolvable:$true] %s23
      %26 = dma.hbm_to_vmem [thread:$0]  %s22, 128, %s24, [#allocation3]
    $region5: #{tpu_custom_call.1} parent=1 // pred_fallthru
      _
    // Predicated region
    $region6: #{tpu_custom_call.1} parent=1 // pred_check
      _
    $region7: #{tpu_custom_call.1} parent=1 // pred_check_branch
      %28 = sbr.rel (0) target = $region9
    $region8: #{tpu_custom_call.1} parent=1 // pred_region
      %30 = vsyncadd [#allocation6], 0
      %s31 = sshll.u32 %s1, 4
      %s32 = int_to_ptr.hbm [resolvable:$true] %s31
      %s33 = sshll.u32 [#allocation5], 4
      %s34 = int_to_ptr.vmem [resolvable:$true] %s33
      %39 = dma.hbm_to_vmem [thread:$0]  %s32, 256, %s34, [#allocation6], 128, 128, 8
    $region9: #{tpu_custom_call.1} parent=1 // pred_fallthru
      _
    // Predicated region
    $region10: #{tpu_custom_call.1} parent=1 // pred_check
      _
    $region11: #{tpu_custom_call.1} parent=1 // pred_check_branch
      %41 = sbr.rel (0) target = $region13
    $region12: #{tpu_custom_call.1} parent=1 // pred_region
      _
    $region13: #{tpu_custom_call.1} parent=1 // pred_fallthru
      _
    // Predicated region
    $region14: #{tpu_custom_call.1} parent=1 // pred_check
      _
    $region15: #{tpu_custom_call.1} parent=1 // pred_check_branch
      %43 = sbr.rel (0) target = $region17
    $region16: #{tpu_custom_call.1} parent=1 // pred_region
      %45 = vsyncadd [#allocation6], 0
      %s46 = sshll.u32 %s3, 4
      %s47 = int_to_ptr.hbm [resolvable:$true] %s46
      %s48 = sshll.u32 [#allocation7], 4
      %s49 = int_to_ptr.vmem [resolvable:$true] %s48
      %54 = dma.hbm_to_vmem [thread:$0]  %s47, 512, %s49, [#allocation6], 128, 128, 8
    $region17: #{tpu_custom_call.1} parent=1 // pred_fallthru
      _
    // Predicated region
    $region18: #{tpu_custom_call.1} parent=1 // pred_check
      _
    $region19: #{tpu_custom_call.1} parent=1 // pred_check_branch
      %56 = sbr.rel (0) target = $region21
    $region20: #{tpu_custom_call.1} parent=1 // pred_region
      _
    $region21: #{tpu_custom_call.1} parent=1 // pred_fallthru
      _
    // Predicated region
    $region22: #{tpu_custom_call.1} parent=1 // pred_check
      _
    $region23: #{tpu_custom_call.1} parent=1 // pred_check_branch
      %58 = sbr.rel (0) target = $region25
    $region24: #{tpu_custom_call.1} parent=1 // pred_region
      %60 = vsyncadd [#allocation9], 0
      %s61 = sshll.u32 %s5, 4
      %s62 = int_to_ptr.hbm [resolvable:$true] %s61
      %s63 = sshll.u32 [#allocation8], 4
      %s64 = int_to_ptr.vmem [resolvable:$true] %s63
      %69 = dma.hbm_to_vmem [thread:$0]  %s62, 1024, %s64, [#allocation9], 128, 128, 8
    $region25: #{tpu_custom_call.1} parent=1 // pred_fallthru
      _
    // Predicated region
    $region26: #{tpu_custom_call.1} parent=1 // pred_check
      _
    $region27: #{tpu_custom_call.1} parent=1 // pred_check_branch
      %71 = sbr.rel (0) target = $region29
    $region28: #{tpu_custom_call.1} parent=1 // pred_region
      _
    $region29: #{tpu_custom_call.1} parent=1 // pred_fallthru
      _
    // Predicated region
    $region30: #{tpu_custom_call.1} parent=1 // pred_check
      _
    $region31: #{tpu_custom_call.1} parent=1 // pred_check_branch
      %73 = sbr.rel (0) target = $region33
    $region32: #{tpu_custom_call.1} parent=1 // pred_region
      %75 = dma.done [#allocation3], 128
    $region33: #{tpu_custom_call.1} parent=1 // pred_fallthru
      _
    // Predicated region
    $region34: #{tpu_custom_call.1} parent=1 // pred_check
      _
    $region35: #{tpu_custom_call.1} parent=1 // pred_check_branch
      %77 = sbr.rel (0) target = $region37
    $region36: #{tpu_custom_call.1} parent=1 // pred_region
      %79 = dma.done [#allocation6], 256
    $region37: #{tpu_custom_call.1} parent=1 // pred_fallthru
      _
    // Predicated region
    $region38: #{tpu_custom_call.1} parent=1 // pred_check
      _
    $region39: #{tpu_custom_call.1} parent=1 // pred_check_branch
      %81 = sbr.rel (0) target = $region41
    $region40: #{tpu_custom_call.1} parent=1 // pred_region
      %83 = dma.done [#allocation6], 512
    $region41: #{tpu_custom_call.1} parent=1 // pred_fallthru
      _
    // Predicated region
    $region42: #{tpu_custom_call.1} parent=1 // pred_check
      _
    $region43: #{tpu_custom_call.1} parent=1 // pred_check_branch
      %85 = sbr.rel (0) target = $region45
    $region44: #{tpu_custom_call.1} parent=1 // pred_region
      %87 = dma.done [#allocation9], 1024
    $region45: #{tpu_custom_call.1} parent=1 // pred_fallthru
      _
    %v88 = vld [vmem:[#allocation2] sm:$0xff]
    %v89 = vld [vmem:[#allocation5] sm:$0xff]
    %v90 = vld [vmem:[#allocation5 + $0x8] sm:$0xff]
    %v91 = vld [vmem:[%s2] sm:$0x1]
    %v93 = vperm.slane %v91, 0
    %vm95 = vcmask 130048
    %v97 = vsel %vm95, %v88, 0
    %99 = vmatpush.msra.mxu0 0.0
    %100 = vmatpush.msra.mxu0 0.0
    %101 = vmatpush.msra.mxu0 0.0
    %102 = vmatpush.msra.mxu0 0.0
    %103 = vmatpush.msra.mxu0 0.0
    %104 = vmatpush.msra.mxu0 0.0
    %105 = vmatpush.msra.mxu0 0.0
    %106 = vmatpush.msra.mxu0 0.0
    %107 = vmatpush.msra.mxu0 0.0
    %108 = vmatpush.msra.mxu0 0.0
    %109 = vmatpush.msra.mxu0 0.0
    %110 = vmatpush.msra.mxu0 0.0
    %111 = vmatpush.msra.mxu0 0.0
    %112 = vmatpush.msra.mxu0 0.0
    %113 = vmatpush.msra.mxu0 %v90
    %114 = vmatpush.msra.mxu0 %v89
    %115 = vmatmul.f32.gmra.mxu0 %v97
    %v116 = vpop.f32.mrf.mxu0
    %v117 = vadd.f32 %v93, %v116
    %118 = vdwg.mxu0
    %v119 = vmax.f32 %v117, 0.0
    %v120 = vld [vmem:[#allocation7] sm:$0xff]
    %v121 = vld [vmem:[#allocation7 + $0x8] sm:$0xff]
    %v122 = vld [vmem:[#allocation7 + $0x10] sm:$0xff]
    %v123 = vld [vmem:[#allocation7 + $0x18] sm:$0xff]
    %v124 = vld [vmem:[%s4] sm:$0x1]
    %v126 = vperm.slane %v124, 0
    %vm128 = vcmask 261120
    %v130 = vsel %vm128, %v119, 0
    %132 = vmatpush.msra.mxu0 0.0
    %133 = vmatpush.msra.mxu0 0.0
    %134 = vmatpush.msra.mxu0 0.0
    %135 = vmatpush.msra.mxu0 0.0
    %136 = vmatpush.msra.mxu0 0.0
    %137 = vmatpush.msra.mxu0 0.0
    %138 = vmatpush.msra.mxu0 0.0
    %139 = vmatpush.msra.mxu0 0.0
    %140 = vmatpush.msra.mxu0 0.0
    %141 = vmatpush.msra.mxu0 0.0
    %142 = vmatpush.msra.mxu0 0.0
    %143 = vmatpush.msra.mxu0 0.0
    %144 = vmatpush.msra.mxu0 %v123
    %145 = vmatpush.msra.mxu0 %v122
    %146 = vmatpush.msra.mxu0 %v121
    %147 = vmatpush.msra.mxu0 %v120
    %148 = vmatmul.f32.gmra.mxu0 %v130
    %v149 = vpop.f32.mrf.mxu0
    %v150 = vadd.f32 %v126, %v149
    %151 = vdwg.mxu0
    %v152 = vmax.f32 %v150, 0.0
    %v153 = vld [vmem:[#allocation8] sm:$0xff]
    %v154 = vld [vmem:[#allocation8 + $0x8] sm:$0xff]
    %v155 = vld [vmem:[#allocation8 + $0x10] sm:$0xff]
    %v156 = vld [vmem:[#allocation8 + $0x18] sm:$0xff]
    %v157 = vld [vmem:[#allocation8 + $0x20] sm:$0xff]
    %v158 = vld [vmem:[#allocation8 + $0x28] sm:$0xff]
    %v159 = vld [vmem:[#allocation8 + $0x30] sm:$0xff]
    %v160 = vld [vmem:[#allocation8 + $0x38] sm:$0xff]
    %v161 = vld [vmem:[%s6] sm:$0x1]
    %v163 = vperm.slane %v161, 0
    %vm165 = vcmask 523264
    %v167 = vsel %vm165, %v152, 0
    %169 = vmatpush.msra.mxu0 0.0
    %170 = vmatpush.msra.mxu0 0.0
    %171 = vmatpush.msra.mxu0 0.0
    %172 = vmatpush.msra.mxu0 0.0
    %173 = vmatpush.msra.mxu0 0.0
    %174 = vmatpush.msra.mxu0 0.0
    %175 = vmatpush.msra.mxu0 0.0
    %176 = vmatpush.msra.mxu0 0.0
    %177 = vmatpush.msra.mxu0 %v160
    %178 = vmatpush.msra.mxu0 %v159
    %179 = vmatpush.msra.mxu0 %v158
    %180 = vmatpush.msra.mxu0 %v157
    %181 = vmatpush.msra.mxu0 %v156
    %182 = vmatpush.msra.mxu0 %v155
    %183 = vmatpush.msra.mxu0 %v154
    %184 = vmatpush.msra.mxu0 %v153
    %185 = vmatmul.f32.gmra.mxu0 %v167
    %v186 = vpop.f32.mrf.mxu0
    %v187 = vadd.f32 %v163, %v186
    %188 = vdwg.mxu0
    %v189 = vxor.u32 %v187, 2147483648
    %v190 = vmul.f32 %v189, 1.442695
    %v191 = vpow.pop %v190
    %v192 = vadd.f32 %v191, 1.0
    %v193 = vrcp.pop %v192
    %v194 = vmul.f32 %v192, %v193
    %v195 = vsub.f32 1.0, %v194
    %v196 = vmul.f32 %v193, %v195
    %v197 = vadd.f32 %v193, %v196
    %vm198 = vweird.f32 %v192
    %vm199 = vweird.f32 %v193
    %vm200 = vmor %vm198, %vm199
    %v201 = vsel %vm200, %v193, %v197
    %v202 = vand.u32 2147483647, %v192
    %vm203 = vcmp.eq.f32.partialorder %v202, 8.507059e+37
    %v204 = vand.u32 %v192, 2147483648
    %v205 = vor.u32 1.1754944e-38, %v204
    %v206 = vsel %vm203, %v205, %v201
    %v207 = vmul.f32 1.0, %v206
    %208 = vst [vmem:[#allocation10] sm:$0xff] %v207
    // Predicated region
    $region46: #{tpu_custom_call.1} parent=1 // pred_check
      _
    $region47: #{tpu_custom_call.1} parent=1 // pred_check_branch
      %210 = sbr.rel (0) target = $region49
    $region48: #{tpu_custom_call.1} parent=1 // pred_region
      %212 = vsyncadd [#allocation4], 0
      %s214 = sshll.u32 [#allocation10], 4
      %s215 = int_to_ptr.vmem [resolvable:$true] %s214
      %s216 = sshll.u32 %s7, 4
      %s217 = int_to_ptr.hbm [resolvable:$true] %s216
      %219 = dma.vmem_to_hbm [thread:$0]  %s215, 128, %s217, [#allocation4]
    $region49: #{tpu_custom_call.1} parent=1 // pred_fallthru
      _
    // Predicated region
    $region50: #{tpu_custom_call.1} parent=1 // pred_check
      _
    $region51: #{tpu_custom_call.1} parent=1 // pred_check_branch
      %221 = sbr.rel (0) target = $region53
    $region52: #{tpu_custom_call.1} parent=1 // pred_region
      %223 = dma.done [#allocation4], 128
    $region53: #{tpu_custom_call.1} parent=1 // pred_fallthru
      _
    %224 = vsyncpa [#allocation3], 1
    %225 = vsyncpa [#allocation6], 1
    %226 = vsyncpa [#allocation9], 1
    %227 = vsyncpa [#allocation4], 1

</llo_original>
